<compile_context>
chip_gen: v5e
topology: v5e:2x2
jax: 0.10.0
libtpu: 0.0.40
codegen_flags: <defaults>
</compile_context>

<pallas_src>
import functools

import jax
import jax.numpy as jnp
from jax.experimental import pallas as pl
from jax.experimental.pallas import tpu as pltpu


def _round_up(a, m):
    return ((a + m - 1) // m) * m


def _vmem_budget_bytes():
    """~75% of per-core VMEM (headroom for compiler scratch); 48 MiB fallback (v7x-safe)."""
    default = 48 * 1024 * 1024
    try:
        info = pltpu.get_tpu_info()
        cap = getattr(info, "vmem_capacity_bytes", None)
        if cap:
            return int(cap) * 3 // 4
    except Exception:
        pass
    return default


def _tensorcores_per_chip():
    """2 on v7x-class chips (megacore grid sharding helps), else 1 (grid is a serial loop)."""
    try:
        kind = jax.devices()[0].device_kind.lower()
        if "v7" in kind or "7x" in kind:
            return 2
    except Exception:
        pass
    return 1


def _mlp_kernel(x_ref, w1_ref, w2_ref, brow_ref, o_ref):
    # fc1 on the MXU: cast the activation tile to bf16 (cheap VPU op), accumulate in f32.
    xb = x_ref[...].astype(w1_ref.dtype)
    h = jnp.dot(xb, w1_ref[...], preferred_element_type=jnp.float32)
    # StarReLU: s * relu(h)^2 + b.  `s` is pre-folded into w2 and `b` into brow
    # (= b * colsum(w2)), so only relu^2 remains.  Squaring is done in bf16 to halve the
    # VMEM footprint of the (bm, Hp) intermediate (it is cast to bf16 for fc2 anyway).
    g = jnp.square(jnp.maximum(h, 0.0).astype(w2_ref.dtype))
    # drop1 / drop2 have p = 0.0 -> identity at inference.
    # TODO(synk): non-zero dropout would need pltpu.prng_seed / pltpu.prng_random_bits
    #             (and would also invalidate the StarReLU-bias folding into brow).
    o = jnp.dot(g, w2_ref[...], preferred_element_type=jnp.float32)
    o_ref[...] = (o + brow_ref[...]).astype(o_ref.dtype)


def pack_mlp_weights(w1, w2, scale, bias):
    """Precompute packed bf16 weights + folded StarReLU bias row.

    Call this ONCE per set of parameters (weights are static across calls) and pass the
    result to `mlp_pallas_packed`; the `mlp_pallas` convenience wrapper repacks per call.
    w1: (C, H), w2: (H, C_out) (already transposed vs. torch's (out, in)); scale/bias: (1,).
    Returns (w1p, w2p, brow_row, P).
    """
    C, H = w1.shape
    C_out = w2.shape[1]

    # Lane-dense packing factor: a C_out < 128 output forces masked partial stores on every
    # tile, so pack P tokens per 128-lane row when the block-diag weight replication is cheap.
    P = 1
    if C == C_out and C < 128 and 128 % C == 0:
        Pc = 128 // C
        if 2 * (Pc * C) * (Pc * H) * 2 <= (8 << 20):  # bf16 bytes of both replicated weights
            P = Pc

    s = scale.reshape(()).astype(jnp.float32)
    b = bias.reshape(()).astype(jnp.float32)
    w1f = w1.astype(jnp.float32)
    w2f = s * w2.astype(jnp.float32)                    # fold StarReLU scale into fc2
    brow = b * jnp.sum(w2.astype(jnp.float32), axis=0)  # fold StarReLU bias: b * colsum(w2)

    if P > 1:
        eye = jnp.eye(P, dtype=jnp.float32)
        w1p = jnp.einsum("pq,ch->pcqh", eye, w1f).reshape(P * C, P * H)     # block-diag x P
        w2p = jnp.einsum("pq,hc->phqc", eye, w2f).reshape(P * H, P * C_out)
        browp = jnp.tile(brow, P)
    else:
        w1p, w2p, browp = w1f, w2f, brow

    w1p = w1p.astype(jnp.bfloat16)   # bf16 MXU operands; accumulation stays f32 in-kernel
    w2p = w2p.astype(jnp.bfloat16)
    browp = browp.reshape(1, P * C_out).astype(jnp.float32)
    return w1p, w2p, browp, P


@functools.partial(jax.jit, static_argnames=("P", "block_rows", "out_dtype"))
def mlp_pallas_packed(x, w1p, w2p, browp, *, P, block_rows=2048, out_dtype=None):
    """x: (B, N, C).  Packed weights from `pack_mlp_weights`.  block_rows = target packed
    rows per grid step (each row is P tokens).  out_dtype defaults to x.dtype; pass
    jnp.bfloat16 to cut store traffic if downstream consumers accept it."""
    B, N, C = x.shape
    Cp, Hp = w1p.shape
    Cop = w2p.shape[1]
    C_out = Cop // P
    assert Cp == P * C
    out_dtype = x.dtype if out_dtype is None else out_dtype

    M = B * N
    Mp = _round_up(M, P)                       # pad only to a multiple of P (<= P-1 rows)
    x2 = x.reshape(M, C)
    if Mp != M:
        x2 = jnp.pad(x2, ((0, Mp - M), (0, 0)))
    M4 = Mp // P
    x4 = x2.reshape(M4, Cp)                    # free row-major view in HBM

    # ---- VMEM-budgeted tile size over packed token rows -----------------------------------
    xsz = x.dtype.itemsize
    osz = jnp.dtype(out_dtype).itemsize
    weight_bytes = (w1p.size * w1p.dtype.itemsize + w2p.size * w2p.dtype.itemsize
                    + browp.size * browp.dtype.itemsize)
    # double-buffered x/out tiles + f32 fc1 result + bf16 squared intermediate, per row
    per_row = 2 * Cp * xsz + 2 * Cop * osz + Hp * 4 + Hp * 2
    budget = _vmem_budget_bytes()
    avail = max(budget - weight_bytes, 16 * per_row)
    bm_cap = max(16, (avail // per_row) // 16 * 16)
    bm = min(_round_up(max(block_rows, 16), 16), bm_cap)
    if M4 <= bm:
        # Whole workload fits in one tile.  Split into 2 "parallel" steps only on 2-TC chips
        # (v7x); on single-TC v5e/v6e the grid is a serial loop and splitting is pure overhead.
        if _tensorcores_per_chip() >= 2 and M4 > 16:
            bm = _round_up(pl.cdiv(M4, 2), 16)
        else:
            bm = M4                             # full-dim block is always a legal BlockSpec
    grid_m = pl.cdiv(M4, bm)                    # ragged last block handled by Pallas masking

    flops = 2 * M4 * (Cp * Hp + Hp * Cop)
    bytes_accessed = x4.size * xsz + weight_bytes + M4 * Cop * osz

    # NOTE: weights stay fully resident (constant index_map).  For very large dims
    # (e.g. C >= 1024, H = 4C) a second "arbitrary" grid axis over H with an f32
    # accumulator scratch would be needed to stay inside v7x's 64 MiB VMEM.
    out4 = pl.pallas_call(
        _mlp_kernel,
        out_shape=jax.ShapeDtypeStruct((M4, Cop), out_dtype),
        grid_spec=pl.GridSpec(
            grid=(grid_m,),
            in_specs=[
                pl.BlockSpec((bm, Cp), lambda i: (i, 0)),    # packed x tile (lane-dense)
                pl.BlockSpec((Cp, Hp), lambda i: (0, 0)),    # w1 (resident)
                pl.BlockSpec((Hp, Cop), lambda i: (0, 0)),   # w2 (resident, scale folded in)
                pl.BlockSpec((1, Cop), lambda i: (0, 0)),    # folded StarReLU bias row
            ],
            out_specs=pl.BlockSpec((bm, Cop), lambda i: (i, 0)),
        ),
        compiler_params=pltpu.CompilerParams(
            dimension_semantics=("parallel",),
            vmem_limit_bytes=budget,
        ),
        cost_estimate=pl.CostEstimate(
            flops=flops, transcendentals=0, bytes_accessed=bytes_accessed),
    )(x4, w1p, w2p, browp)

    out = out4.reshape(Mp, C_out)
    if Mp != M:
        out = out[:M]
    return out.reshape(B, N, C_out)


def mlp_pallas(x, w1, w2, scale, bias, *, block_rows=2048, out_dtype=None):
    """Convenience wrapper: packs weights each call.  For static weights, call
    pack_mlp_weights once and use mlp_pallas_packed directly."""
    w1p, w2p, browp, P = pack_mlp_weights(w1, w2, scale, bias)
    return mlp_pallas_packed(x, w1p, w2p, browp, P=P,
                             block_rows=block_rows, out_dtype=out_dtype)


def mlp_reference(x, w1, w2, scale, bias):
    h = jnp.einsum("bnc,ch->bnh", x, w1)
    h = scale.reshape(()) * jnp.square(jnp.maximum(h, 0.0)) + bias.reshape(())
    return jnp.einsum("bnh,ho->bno", h, w2)


if __name__ == "__main__":
    # Module config: Mlp(dim=32, mlp_ratio=4, bias=False, drop=0.0)
    #   fc1: 32 -> 128, StarReLU(scale=1.0, bias=0.0), fc2: 128 -> 32
    B, N, dim = 2, 64, 32
    hidden = 4 * dim

    key = jax.random.PRNGKey(0)
    kx, k1, k2, kx2 = jax.random.split(key, 4)
    x = jax.random.normal(kx, (B, N, dim), dtype=jnp.float32)
    # PyTorch nn.Linear(bias=False) computes x @ W.T; we materialize the (in, out) matrices.
    w1 = jax.random.normal(k1, (dim, hidden), dtype=jnp.float32) * 0.02
    w2 = jax.random.normal(k2, (hidden, dim), dtype=jnp.float32) * 0.02
    scale = jnp.ones((1,), dtype=jnp.float32)    # StarReLU scale_value = 1.0
    bias = jnp.zeros((1,), dtype=jnp.float32)    # StarReLU bias_value  = 0.0

    y = jax.block_until_ready(mlp_pallas(x, w1, w2, scale, bias))
    y_ref = mlp_reference(x, w1, w2, scale, bias)
    assert y.shape == (B, N, dim), y.shape
    # bf16 MXU operands (f32 accumulation) vs f32 reference -> loosened tolerance.
    assert jnp.allclose(y, y_ref, atol=3e-3, rtol=3e-2), float(jnp.max(jnp.abs(y - y_ref)))

    # Exercise the scale/bias folding path with non-default (learnable) StarReLU params.
    scale2 = jnp.full((1,), 1.25, dtype=jnp.float32)
    bias2 = jnp.full((1,), 0.1, dtype=jnp.float32)
    y2 = jax.block_until_ready(mlp_pallas(x, w1, w2, scale2, bias2))
    y2_ref = mlp_reference(x, w1, w2, scale2, bias2)
    assert jnp.allclose(y2, y2_ref, atol=3e-3, rtol=3e-2), float(jnp.max(jnp.abs(y2 - y2_ref)))

    # Ragged last grid block: M=160 tokens -> 40 packed rows, block_rows=16 -> 3 grid steps,
    # last step partial.  Verifies the no-prepad path (Pallas masks the OOB output portion).
    x3 = jax.random.normal(kx2, (2, 80, dim), dtype=jnp.float32)
    y3 = jax.block_until_ready(mlp_pallas(x3, w1, w2, scale2, bias2, block_rows=16))
    y3_ref = mlp_reference(x3, w1, w2, scale2, bias2)
    assert y3.shape == (2, 80, dim), y3.shape
    assert jnp.allclose(y3, y3_ref, atol=3e-3, rtol=3e-2), float(jnp.max(jnp.abs(y3 - y3_ref)))

    print("KERNEL_OK")
</pallas_src>

<mosaic_0001>
module attributes {stable_mosaic.version = 11 : i64} {
  func.func @_mlp_kernel(%arg0: i32, %arg1: memref<32x128xf32, #tpu.memory_space<vmem>>, %arg2: memref<128x512xbf16, #tpu.memory_space<vmem>>, %arg3: memref<512x128xbf16, #tpu.memory_space<vmem>>, %arg4: memref<1x128xf32, #tpu.memory_space<vmem>>, %arg5: memref<32x128xf32, #tpu.memory_space<vmem>>) attributes {dimension_semantics = [#tpu.dimension_semantics<parallel>], iteration_bounds = array<i64: 1>, scalar_prefetch = 0 : i64, scratch_operands = 0 : i64, tpu.core_type = #tpu.core_type<tc>, window_params = [{transform_indices = @transform_0, window_bounds = array<i64: 32, 128>}, {pipeline_mode = #tpu.pipeline_mode<synchronous>, transform_indices = @transform_1, window_bounds = array<i64: 128, 512>}, {pipeline_mode = #tpu.pipeline_mode<synchronous>, transform_indices = @transform_2, window_bounds = array<i64: 512, 128>}, {pipeline_mode = #tpu.pipeline_mode<synchronous>, transform_indices = @transform_3, window_bounds = array<i64: 1, 128>}, {transform_indices = @transform_4, window_bounds = array<i64: 32, 128>}]} {
    %c0 = arith.constant 0 : index
    %c0_0 = arith.constant 0 : index
    %0 = vector.load %arg1[%c0, %c0_0] : memref<32x128xf32, #tpu.memory_space<vmem>>, vector<32x128xf32>
    %1 = arith.truncf %0 : vector<32x128xf32> to vector<32x128xbf16>
    %c0_1 = arith.constant 0 : index
    %c0_2 = arith.constant 0 : index
    %2 = vector.load %arg2[%c0_1, %c0_2] : memref<128x512xbf16, #tpu.memory_space<vmem>>, vector<128x512xbf16>
    %cst = arith.constant dense<0.000000e+00> : vector<32x512xf32>
    %3 = tpu.matmul %1, %2, %cst {dimension_numbers = #tpu.dot_dimension_numbers<[1], [0], [0], [1], [0, 0, 1, 1], [], []>} : vector<32x128xbf16>, vector<128x512xbf16>, vector<32x512xf32> -> vector<32x512xf32>
    %cst_3 = arith.constant 0.000000e+00 : f32
    %4 = vector.broadcast %cst_3 : f32 to vector<32x512xf32>
    %5 = arith.maximumf %3, %4 : vector<32x512xf32>
    %6 = arith.truncf %5 : vector<32x512xf32> to vector<32x512xbf16>
    %7 = arith.mulf %6, %6 : vector<32x512xbf16>
    %c0_4 = arith.constant 0 : index
    %c0_5 = arith.constant 0 : index
    %8 = vector.load %arg3[%c0_4, %c0_5] : memref<512x128xbf16, #tpu.memory_space<vmem>>, vector<512x128xbf16>
    %cst_6 = arith.constant dense<0.000000e+00> : vector<32x128xf32>
    %9 = tpu.matmul %7, %8, %cst_6 {dimension_numbers = #tpu.dot_dimension_numbers<[1], [0], [0], [1], [0, 0, 1, 1], [], []>} : vector<32x512xbf16>, vector<512x128xbf16>, vector<32x128xf32> -> vector<32x128xf32>
    %c0_7 = arith.constant 0 : index
    %c0_8 = arith.constant 0 : index
    %10 = vector.load %arg4[%c0_7, %c0_8] : memref<1x128xf32, #tpu.memory_space<vmem>>, vector<1x128xf32>
    %11 = vector.broadcast %10 : vector<1x128xf32> to vector<32x128xf32>
    %12 = arith.addf %9, %11 : vector<32x128xf32>
    %c0_9 = arith.constant 0 : index
    %c0_10 = arith.constant 0 : index
    %13 = vector.load %arg5[%c0_9, %c0_10] : memref<32x128xf32, #tpu.memory_space<vmem>>, vector<32x128xf32>
    tpu.vector_store %arg5[%c0_9, %c0_10], %12 {strides = array<i32>} : memref<32x128xf32, #tpu.memory_space<vmem>>, vector<32x128xf32>,
    return
  }
  func.func @transform_0(%arg0: i32) -> (i32, i32) {
    %c0_i32 = arith.constant 0 : i32
    %c0_i32_0 = arith.constant 0 : i32
    return %arg0, %c0_i32 : i32, i32
  }
  func.func @transform_1(%arg0: i32) -> (i32, i32) {
    %c0_i32 = arith.constant 0 : i32
    %c0_i32_0 = arith.constant 0 : i32
    %c0_i32_1 = arith.constant 0 : i32
    return %c0_i32, %c0_i32_0 : i32, i32
  }
  func.func @transform_2(%arg0: i32) -> (i32, i32) {
    %c0_i32 = arith.constant 0 : i32
    %c0_i32_0 = arith.constant 0 : i32
    %c0_i32_1 = arith.constant 0 : i32
    return %c0_i32, %c0_i32_0 : i32, i32
  }
  func.func @transform_3(%arg0: i32) -> (i32, i32) {
    %c0_i32 = arith.constant 0 : i32
    %c0_i32_0 = arith.constant 0 : i32
    %c0_i32_1 = arith.constant 0 : i32
    return %c0_i32, %c0_i32_0 : i32, i32
  }
  func.func @transform_4(%arg0: i32) -> (i32, i32) {
    %c0_i32 = arith.constant 0 : i32
    %c0_i32_0 = arith.constant 0 : i32
    return %arg0, %c0_i32 : i32, i32
  }
}

</mosaic_0001>

<llo_original>
// kernel: mlp_pallas_packed.1
$region0: #{mlp_pallas_packed.1}
  #allocation0 [shape = 'u32[]', space=smem, size = 0x4, offset = 0x4, fixed_abs, tag = 'smem constant byte address 0x4 - core index']
  #allocation1 [shape = 'u32[72,128]{1,0:T(1,128)}', space=vmem, size = 0x9000, scoped, tag = 'internal scratch']
  %s0 = inlined_call_operand.vmem [shape: f32[32,128], index: 0, kind: input, shape index: {}]
  %s1 = inlined_call_operand.vmem [shape: bf16[128,512], index: 1, kind: input, shape index: {}]
  %s2 = inlined_call_operand.hbm [shape: bf16[512,128], index: 2, kind: input, shape index: {}]
  %s3 = inlined_call_operand.vmem [shape: f32[1,128], index: 3, kind: input, shape index: {}]
  %s4 = inlined_call_operand.vmem [shape: f32[32,128], index: 4, kind: output, shape index: {}]
  %s5 = sld [smem:[#allocation0]]
  $region30: #{mlp_pallas_packed.1} parent=0
    _
  %s7 = ssub.s32 1, %s5
  %s8 = scalar_select 0, %s7, %s5
  $region1: #{mlp_pallas_packed.1} parent=0
    #allocation2 [shape = 'u8[131072]{0}', space=vmem, size = 0x20000, scoped, tag = 'input window, operand 2, single buffered']
    #allocation3 [shape = 's32[1]{0}', space=sflag, size = 0x4, scoped, tag = 'scoped memory for mlp_pallas_packed.1']
    %9 = vsyncpa [#allocation3], 0
    // Predicated region
    $region2: #{mlp_pallas_packed.1} parent=1 // pred_check
      _
    $region3: #{mlp_pallas_packed.1} parent=1 // pred_check_branch
      %11 = sbr.rel (0) target = $region5
    $region4: #{mlp_pallas_packed.1} parent=1 // pred_region
      _
    $region5: #{mlp_pallas_packed.1} parent=1 // pred_fallthru
      _
    // Predicated region
    $region6: #{mlp_pallas_packed.1} parent=1 // pred_check
      _
    $region7: #{mlp_pallas_packed.1} parent=1 // pred_check_branch
      %13 = sbr.rel (0) target = $region9
    $region8: #{mlp_pallas_packed.1} parent=1 // pred_region
      _
    $region9: #{mlp_pallas_packed.1} parent=1 // pred_fallthru
      _
    // Predicated region
    $region10: #{mlp_pallas_packed.1} parent=1 // pred_check
      _
    $region11: #{mlp_pallas_packed.1} parent=1 // pred_check_branch
      %15 = sbr.rel (0) target = $region13
    $region12: #{mlp_pallas_packed.1} parent=1 // pred_region
      %17 = vsyncadd [#allocation3], 0
      %s18 = sshll.u32 %s2, 4
      %s19 = int_to_ptr.hbm [resolvable:$true] %s18
      %s20 = sshll.u32 [#allocation2], 4
      %s21 = int_to_ptr.vmem [resolvable:$true] %s20
      %26 = dma.hbm_to_vmem [thread:$0]  %s19, 4096, %s21, [#allocation3], 64, 64, 4
    $region13: #{mlp_pallas_packed.1} parent=1 // pred_fallthru
      _
    // Predicated region
    $region14: #{mlp_pallas_packed.1} parent=1 // pred_check
      _
    $region15: #{mlp_pallas_packed.1} parent=1 // pred_check_branch
      %28 = sbr.rel (0) target = $region17
    $region16: #{mlp_pallas_packed.1} parent=1 // pred_region
      _
    $region17: #{mlp_pallas_packed.1} parent=1 // pred_fallthru
      _
    // Predicated region
    $region18: #{mlp_pallas_packed.1} parent=1 // pred_check
      _
    $region19: #{mlp_pallas_packed.1} parent=1 // pred_check_branch
      %30 = sbr.rel (0) target = $region21
    $region20: #{mlp_pallas_packed.1} parent=1 // pred_region
      %32 = dma.done [#allocation3], 4096
    $region21: #{mlp_pallas_packed.1} parent=1 // pred_fallthru
      _
    %v33 = vld [vmem:[%s0] sm:$0xff]
    %v34 = vld [vmem:[%s0 + $0x8] sm:$0xff]
    %v35 = vld [vmem:[%s0 + $0x10] sm:$0xff]
    %v36 = vld [vmem:[%s0 + $0x18] sm:$0xff]
    %v37 = vpack.c.bf16 %v34, %v33
    %v38 = vpack.c.bf16 %v36, %v35
    %v39 = vld [vmem:[%s1] sm:$0xff]
    %v40 = vld [vmem:[%s1 + $0x8] sm:$0xff]
    %v41 = vld [vmem:[%s1 + $0x10] sm:$0xff]
    %v42 = vld [vmem:[%s1 + $0x18] sm:$0xff]
    %v43 = vld [vmem:[%s1 + $0x20] sm:$0xff]
    %v44 = vld [vmem:[%s1 + $0x28] sm:$0xff]
    %v45 = vld [vmem:[%s1 + $0x30] sm:$0xff]
    %v46 = vld [vmem:[%s1 + $0x38] sm:$0xff]
    %v47 = vld [vmem:[%s1 + $0x40] sm:$0xff]
    %v48 = vld [vmem:[%s1 + $0x48] sm:$0xff]
    %v49 = vld [vmem:[%s1 + $0x50] sm:$0xff]
    %v50 = vld [vmem:[%s1 + $0x58] sm:$0xff]
    %v51 = vld [vmem:[%s1 + $0x60] sm:$0xff]
    %v52 = vld [vmem:[%s1 + $0x68] sm:$0xff]
    %v53 = vld [vmem:[%s1 + $0x70] sm:$0xff]
    %v54 = vld [vmem:[%s1 + $0x78] sm:$0xff]
    %v55 = vld [vmem:[%s1 + $0x80] sm:$0xff]
    %v56 = vld [vmem:[%s1 + $0x88] sm:$0xff]
    %v57 = vld [vmem:[%s1 + $0x90] sm:$0xff]
    %v58 = vld [vmem:[%s1 + $0x98] sm:$0xff]
    %v59 = vld [vmem:[%s1 + $0xa0] sm:$0xff]
    %v60 = vld [vmem:[%s1 + $0xa8] sm:$0xff]
    %v61 = vld [vmem:[%s1 + $0xb0] sm:$0xff]
    %v62 = vld [vmem:[%s1 + $0xb8] sm:$0xff]
    %v63 = vld [vmem:[%s1 + $0xc0] sm:$0xff]
    %v64 = vld [vmem:[%s1 + $0xc8] sm:$0xff]
    %v65 = vld [vmem:[%s1 + $0xd0] sm:$0xff]
    %v66 = vld [vmem:[%s1 + $0xd8] sm:$0xff]
    %v67 = vld [vmem:[%s1 + $0xe0] sm:$0xff]
    %v68 = vld [vmem:[%s1 + $0xe8] sm:$0xff]
    %v69 = vld [vmem:[%s1 + $0xf0] sm:$0xff]
    %v70 = vld [vmem:[%s1 + $0xf8] sm:$0xff]
    %v103 = vunpack.c.l.b16 %v39
    %v104 = vunpack.c.h.b16 %v39
    %v105 = vunpack.c.l.b16 %v40
    %v106 = vunpack.c.h.b16 %v40
    %v107 = vunpack.c.l.b16 %v41
    %v108 = vunpack.c.h.b16 %v41
    %v109 = vunpack.c.l.b16 %v42
    %v110 = vunpack.c.h.b16 %v42
    %v111 = vunpack.c.l.b16 %v43
    %v112 = vunpack.c.h.b16 %v43
    %v113 = vunpack.c.l.b16 %v44
    %v114 = vunpack.c.h.b16 %v44
    %v115 = vunpack.c.l.b16 %v45
    %v116 = vunpack.c.h.b16 %v45
    %v117 = vunpack.c.l.b16 %v46
    %v118 = vunpack.c.h.b16 %v46
    %v119 = vunpack.c.l.b16 %v47
    %v120 = vunpack.c.h.b16 %v47
    %v121 = vunpack.c.l.b16 %v48
    %v122 = vunpack.c.h.b16 %v48
    %v123 = vunpack.c.l.b16 %v49
    %v124 = vunpack.c.h.b16 %v49
    %v125 = vunpack.c.l.b16 %v50
    %v126 = vunpack.c.h.b16 %v50
    %v127 = vunpack.c.l.b16 %v51
    %v128 = vunpack.c.h.b16 %v51
    %v129 = vunpack.c.l.b16 %v52
    %v130 = vunpack.c.h.b16 %v52
    %v131 = vunpack.c.l.b16 %v53
    %v132 = vunpack.c.h.b16 %v53
    %v133 = vunpack.c.l.b16 %v54
    %v134 = vunpack.c.h.b16 %v54
    %v135 = vunpack.c.l.b16 %v55
    %v136 = vunpack.c.h.b16 %v55
    %v137 = vunpack.c.l.b16 %v56
    %v138 = vunpack.c.h.b16 %v56
    %v139 = vunpack.c.l.b16 %v57
    %v140 = vunpack.c.h.b16 %v57
    %v141 = vunpack.c.l.b16 %v58
    %v142 = vunpack.c.h.b16 %v58
    %v143 = vunpack.c.l.b16 %v59
    %v144 = vunpack.c.h.b16 %v59
    %v145 = vunpack.c.l.b16 %v60
    %v146 = vunpack.c.h.b16 %v60
    %v147 = vunpack.c.l.b16 %v61
    %v148 = vunpack.c.h.b16 %v61
    %v149 = vunpack.c.l.b16 %v62
    %v150 = vunpack.c.h.b16 %v62
    %v151 = vunpack.c.l.b16 %v63
    %v152 = vunpack.c.h.b16 %v63
    %v153 = vunpack.c.l.b16 %v64
    %v154 = vunpack.c.h.b16 %v64
    %v155 = vunpack.c.l.b16 %v65
    %v156 = vunpack.c.h.b16 %v65
    %v157 = vunpack.c.l.b16 %v66
    %v158 = vunpack.c.h.b16 %v66
    %v159 = vunpack.c.l.b16 %v67
    %v160 = vunpack.c.h.b16 %v67
    %v161 = vunpack.c.l.b16 %v68
    %v162 = vunpack.c.h.b16 %v68
    %v163 = vunpack.c.l.b16 %v69
    %v164 = vunpack.c.h.b16 %v69
    %v165 = vunpack.c.l.b16 %v70
    %v166 = vunpack.c.h.b16 %v70
    %v167 = vpack.c.b16 %v107, %v103
    %v168 = vpack.c.b16 %v108, %v104
    %v169 = vpack.c.b16 %v109, %v105
    %v170 = vpack.c.b16 %v110, %v106
    %v171 = vpack.c.b16 %v115, %v111
    %v172 = vpack.c.b16 %v116, %v112
    %v173 = vpack.c.b16 %v117, %v113
    %v174 = vpack.c.b16 %v118, %v114
    %v175 = vpack.c.b16 %v123, %v119
    %v176 = vpack.c.b16 %v124, %v120
    %v177 = vpack.c.b16 %v125, %v121
    %v178 = vpack.c.b16 %v126, %v122
    %v179 = vpack.c.b16 %v131, %v127
    %v180 = vpack.c.b16 %v132, %v128
    %v181 = vpack.c.b16 %v133, %v129
    %v182 = vpack.c.b16 %v134, %v130
    %v183 = vpack.c.b16 %v139, %v135
    %v184 = vpack.c.b16 %v140, %v136
    %v185 = vpack.c.b16 %v141, %v137
    %v186 = vpack.c.b16 %v142, %v138
    %v187 = vpack.c.b16 %v147, %v143
    %v188 = vpack.c.b16 %v148, %v144
    %v189 = vpack.c.b16 %v149, %v145
    %v190 = vpack.c.b16 %v150, %v146
    %v191 = vpack.c.b16 %v155, %v151
    %v192 = vpack.c.b16 %v156, %v152
    %v193 = vpack.c.b16 %v157, %v153
    %v194 = vpack.c.b16 %v158, %v154
    %v195 = vpack.c.b16 %v163, %v159
    %v196 = vpack.c.b16 %v164, %v160
    %v197 = vpack.c.b16 %v165, %v161
    %v198 = vpack.c.b16 %v166, %v162
    %231 = vmatpush.bf16.msra.mxu0 %v195
    %232 = vmatpush.bf16.msra.mxu0 %v191
    %233 = vmatpush.bf16.msra.mxu0 %v187
    %234 = vmatpush.bf16.msra.mxu0 %v183
    %235 = vmatpush.bf16.msra.mxu0 %v179
    %236 = vmatpush.bf16.msra.mxu0 %v175
    %237 = vmatpush.bf16.msra.mxu0 %v171
    %238 = vmatpush.bf16.msra.mxu0 %v167
    %239 = vmatmul.bf16.gmra.mxu0 %v37
    %v240 = vpop.f32.mrf.mxu0
    %v241 = vadd.f32 0.0, %v240
    %v242 = vpop.f32.mrf.mxu0
    %v243 = vadd.f32 0.0, %v242
    %244 = vmatmul.bf16.gmra.mxu0 %v38
    %v245 = vpop.f32.mrf.mxu0
    %v246 = vadd.f32 0.0, %v245
    %v247 = vpop.f32.mrf.mxu0
    %v248 = vadd.f32 0.0, %v247
    %249 = vdwg.mxu0
    %250 = vmatpush.bf16.msra.mxu0 %v196
    %251 = vmatpush.bf16.msra.mxu0 %v192
    %252 = vmatpush.bf16.msra.mxu0 %v188
    %253 = vmatpush.bf16.msra.mxu0 %v184
    %254 = vmatpush.bf16.msra.mxu0 %v180
    %255 = vmatpush.bf16.msra.mxu0 %v176
    %256 = vmatpush.bf16.msra.mxu0 %v172
    %257 = vmatpush.bf16.msra.mxu0 %v168
    %258 = vmatmul.bf16.gmra.mxu0 %v37
    %v259 = vpop.f32.mrf.mxu0
    %v260 = vadd.f32 0.0, %v259
    %v261 = vpop.f32.mrf.mxu0
    %v262 = vadd.f32 0.0, %v261
    %263 = vmatmul.bf16.gmra.mxu0 %v38
    %v264 = vpop.f32.mrf.mxu0
    %v265 = vadd.f32 0.0, %v264
    %v266 = vpop.f32.mrf.mxu0
    %v267 = vadd.f32 0.0, %v266
    %268 = vdwg.mxu0
    %269 = vmatpush.bf16.msra.mxu0 %v197
    %270 = vmatpush.bf16.msra.mxu0 %v193
    %271 = vmatpush.bf16.msra.mxu0 %v189
    %272 = vmatpush.bf16.msra.mxu0 %v185
    %273 = vmatpush.bf16.msra.mxu0 %v181
    %274 = vmatpush.bf16.msra.mxu0 %v177
    %275 = vmatpush.bf16.msra.mxu0 %v173
    %276 = vmatpush.bf16.msra.mxu0 %v169
    %277 = vmatmul.bf16.gmra.mxu0 %v37
    %v278 = vpop.f32.mrf.mxu0
    %v279 = vadd.f32 0.0, %v278
    %v280 = vpop.f32.mrf.mxu0
    %v281 = vadd.f32 0.0, %v280
    %282 = vmatmul.bf16.gmra.mxu0 %v38
    %v283 = vpop.f32.mrf.mxu0
    %v284 = vadd.f32 0.0, %v283
    %v285 = vpop.f32.mrf.mxu0
    %v286 = vadd.f32 0.0, %v285
    %287 = vdwg.mxu0
    %288 = vmatpush.bf16.msra.mxu0 %v198
    %289 = vmatpush.bf16.msra.mxu0 %v194
    %290 = vmatpush.bf16.msra.mxu0 %v190
    %291 = vmatpush.bf16.msra.mxu0 %v186
    %292 = vmatpush.bf16.msra.mxu0 %v182
    %293 = vmatpush.bf16.msra.mxu0 %v178
    %294 = vmatpush.bf16.msra.mxu0 %v174
    %295 = vmatpush.bf16.msra.mxu0 %v170
    %296 = vmatmul.bf16.gmra.mxu0 %v37
    %v297 = vpop.f32.mrf.mxu0
    %v298 = vadd.f32 0.0, %v297
    %v299 = vpop.f32.mrf.mxu0
    %v300 = vadd.f32 0.0, %v299
    %301 = vmatmul.bf16.gmra.mxu0 %v38
    %v302 = vpop.f32.mrf.mxu0
    %v303 = vadd.f32 0.0, %v302
    %v304 = vpop.f32.mrf.mxu0
    %v305 = vadd.f32 0.0, %v304
    %306 = vdwg.mxu0
    %v307 = vmax.f32 %v241, 0.0
    %v308 = vmax.f32 %v260, 0.0
    %v309 = vmax.f32 %v279, 0.0
    %v310 = vmax.f32 %v298, 0.0
    %v311 = vmax.f32 %v243, 0.0
    %v312 = vmax.f32 %v262, 0.0
    %v313 = vmax.f32 %v281, 0.0
    %v314 = vmax.f32 %v300, 0.0
    %v315 = vmax.f32 %v246, 0.0
    %v316 = vmax.f32 %v265, 0.0
    %v317 = vmax.f32 %v284, 0.0
    %v318 = vmax.f32 %v303, 0.0
    %v319 = vmax.f32 %v248, 0.0
    %v320 = vmax.f32 %v267, 0.0
    %v321 = vmax.f32 %v286, 0.0
    %v322 = vmax.f32 %v305, 0.0
    %v323 = vpack.c.bf16 %v308, %v307
    %v324 = vpack.c.bf16 %v310, %v309
    %v325 = vpack.c.bf16 %v312, %v311
    %v326 = vpack.c.bf16 %v314, %v313
    %v327 = vpack.c.bf16 %v316, %v315
    %v328 = vpack.c.bf16 %v318, %v317
    %v329 = vpack.c.bf16 %v320, %v319
    %v330 = vpack.c.bf16 %v322, %v321
    %v331 = vunpack.c.l.bf16 %v323
    %v332 = vunpack.c.h.bf16 %v323
    %v333 = vunpack.c.l.bf16 %v324
    %v334 = vunpack.c.h.bf16 %v324
    %v335 = vunpack.c.l.bf16 %v325
    %v336 = vunpack.c.h.bf16 %v325
    %v337 = vunpack.c.l.bf16 %v326
    %v338 = vunpack.c.h.bf16 %v326
    %v339 = vunpack.c.l.bf16 %v327
    %v340 = vunpack.c.h.bf16 %v327
    %v341 = vunpack.c.l.bf16 %v328
    %v342 = vunpack.c.h.bf16 %v328
    %v343 = vunpack.c.l.bf16 %v329
    %v344 = vunpack.c.h.bf16 %v329
    %v345 = vunpack.c.l.bf16 %v330
    %v346 = vunpack.c.h.bf16 %v330
    %v347 = vmul.f32 %v331, %v331
    %v348 = vmul.f32 %v332, %v332
    %v349 = vmul.f32 %v333, %v333
    %v350 = vmul.f32 %v334, %v334
    %v351 = vmul.f32 %v335, %v335
    %v352 = vmul.f32 %v336, %v336
    %v353 = vmul.f32 %v337, %v337
    %v354 = vmul.f32 %v338, %v338
    %v355 = vmul.f32 %v339, %v339
    %v356 = vmul.f32 %v340, %v340
    %v357 = vmul.f32 %v341, %v341
    %v358 = vmul.f32 %v342, %v342
    %v359 = vmul.f32 %v343, %v343
    %v360 = vmul.f32 %v344, %v344
    %v361 = vmul.f32 %v345, %v345
    %v362 = vmul.f32 %v346, %v346
    %v363 = vpack.c.bf16 %v351, %v347
    %v364 = vpack.c.bf16 %v352, %v348
    %v365 = vpack.c.bf16 %v353, %v349
    %v366 = vpack.c.bf16 %v354, %v350
    %v367 = vpack.c.bf16 %v359, %v355
    %v368 = vpack.c.bf16 %v360, %v356
    %v369 = vpack.c.bf16 %v361, %v357
    %v370 = vpack.c.bf16 %v362, %v358
    %v371 = vld [vmem:[#allocation2] sm:$0xf]
    %v372 = vld [vmem:[#allocation2 + $0x4] sm:$0xf]
    %v373 = vld [vmem:[#allocation2 + $0x8] sm:$0xf]
    %v374 = vld [vmem:[#allocation2 + $0xc] sm:$0xf]
    %v375 = vld [vmem:[#allocation2 + $0x10] sm:$0xf]
    %v376 = vld [vmem:[#allocation2 + $0x14] sm:$0xf]
    %v377 = vld [vmem:[#allocation2 + $0x18] sm:$0xf]
    %v378 = vld [vmem:[#allocation2 + $0x1c] sm:$0xf]
    %v379 = vld [vmem:[#allocation2 + $0x20] sm:$0xf]
    %v380 = vld [vmem:[#allocation2 + $0x24] sm:$0xf]
    %v381 = vld [vmem:[#allocation2 + $0x28] sm:$0xf]
    %v382 = vld [vmem:[#allocation2 + $0x2c] sm:$0xf]
    %v383 = vld [vmem:[#allocation2 + $0x30] sm:$0xf]
    %v384 = vld [vmem:[#allocation2 + $0x34] sm:$0xf]
    %v385 = vld [vmem:[#allocation2 + $0x38] sm:$0xf]
    %v386 = vld [vmem:[#allocation2 + $0x3c] sm:$0xf]
    %v387 = vld [vmem:[#allocation2 + $0x40] sm:$0xf]
    %v388 = vld [vmem:[#allocation2 + $0x44] sm:$0xf]
    %v389 = vld [vmem:[#allocation2 + $0x48] sm:$0xf]
    %v390 = vld [vmem:[#allocation2 + $0x4c] sm:$0xf]
    %v391 = vld [vmem:[#allocation2 + $0x50] sm:$0xf]
    %v392 = vld [vmem:[#allocation2 + $0x54] sm:$0xf]
    %v393 = vld [vmem:[#allocation2 + $0x58] sm:$0xf]
    %v394 = vld [vmem:[#allocation2 + $0x5c] sm:$0xf]
    %v395 = vld [vmem:[#allocation2 + $0x60] sm:$0xf]
    %v396 = vld [vmem:[#allocation2 + $0x64] sm:$0xf]
    %v397 = vld [vmem:[#allocation2 + $0x68] sm:$0xf]
    %v398 = vld [vmem:[#allocation2 + $0x6c] sm:$0xf]
    %v399 = vld [vmem:[#allocation2 + $0x70] sm:$0xf]
    %v400 = vld [vmem:[#allocation2 + $0x74] sm:$0xf]
    %v401 = vld [vmem:[#allocation2 + $0x78] sm:$0xf]
    %v402 = vld [vmem:[#allocation2 + $0x7c] sm:$0xf]
    %v403 = vld [vmem:[#allocation2 + $0x80] sm:$0xf]
    %v404 = vld [vmem:[#allocation2 + $0x84] sm:$0xf]
    %v405 = vld [vmem:[#allocation2 + $0x88] sm:$0xf]
    %v406 = vld [vmem:[#allocation2 + $0x8c] sm:$0xf]
    %v407 = vld [vmem:[#allocation2 + $0x90] sm:$0xf]
    %v408 = vld [vmem:[#allocation2 + $0x94] sm:$0xf]
    %v409 = vld [vmem:[#allocation2 + $0x98] sm:$0xf]
    %v410 = vld [vmem:[#allocation2 + $0x9c] sm:$0xf]
    %v411 = vld [vmem:[#allocation2 + $0xa0] sm:$0xf]
    %v412 = vld [vmem:[#allocation2 + $0xa4] sm:$0xf]
    %v413 = vld [vmem:[#allocation2 + $0xa8] sm:$0xf]
    %v414 = vld [vmem:[#allocation2 + $0xac] sm:$0xf]
    %v415 = vld [vmem:[#allocation2 + $0xb0] sm:$0xf]
    %v416 = vld [vmem:[#allocation2 + $0xb4] sm:$0xf]
    %v417 = vld [vmem:[#allocation2 + $0xb8] sm:$0xf]
    %v418 = vld [vmem:[#allocation2 + $0xbc] sm:$0xf]
    %v419 = vld [vmem:[#allocation2 + $0xc0] sm:$0xf]
    %v420 = vld [vmem:[#allocation2 + $0xc4] sm:$0xf]
    %v421 = vld [vmem:[#allocation2 + $0xc8] sm:$0xf]
    %v422 = vld [vmem:[#allocation2 + $0xcc] sm:$0xf]
    %v423 = vld [vmem:[#allocation2 + $0xd0] sm:$0xf]
    %v424 = vld [vmem:[#allocation2 + $0xd4] sm:$0xf]
    %v425 = vld [vmem:[#allocation2 + $0xd8] sm:$0xf]
    %v426 = vld [vmem:[#allocation2 + $0xdc] sm:$0xf]
    %v427 = vld [vmem:[#allocation2 + $0xe0] sm:$0xf]
    %v428 = vld [vmem:[#allocation2 + $0xe4] sm:$0xf]
    %v429 = vld [vmem:[#allocation2 + $0xe8] sm:$0xf]
    %v430 = vld [vmem:[#allocation2 + $0xec] sm:$0xf]
    %v431 = vld [vmem:[#allocation2 + $0xf0] sm:$0xf]
    %v432 = vld [vmem:[#allocation2 + $0xf4] sm:$0xf]
    %v433 = vld [vmem:[#allocation2 + $0xf8] sm:$0xf]
    %v434 = vld [vmem:[#allocation2 + $0xfc] sm:$0xf]
    %v435 = vld [vmem:[%s3] sm:$0x1]
    %v437 = vperm.slane %v435, 0
    %v503 = vunpack.c.l.b16 %v371
    %v504 = vunpack.c.l.b16 %v372
    %v505 = vunpack.c.l.b16 %v373
    %v506 = vunpack.c.l.b16 %v374
    %v507 = vunpack.c.l.b16 %v375
    %v508 = vunpack.c.l.b16 %v376
    %v509 = vunpack.c.l.b16 %v377
    %v510 = vunpack.c.l.b16 %v378
    %v511 = vunpack.c.l.b16 %v379
    %v512 = vunpack.c.l.b16 %v380
    %v513 = vunpack.c.l.b16 %v381
    %v514 = vunpack.c.l.b16 %v382
    %v515 = vunpack.c.l.b16 %v383
    %v516 = vunpack.c.l.b16 %v384
    %v517 = vunpack.c.l.b16 %v385
    %v518 = vunpack.c.l.b16 %v386
    %v519 = vunpack.c.l.b16 %v387
    %v520 = vunpack.c.l.b16 %v388
    %v521 = vunpack.c.l.b16 %v389
    %v522 = vunpack.c.l.b16 %v390
    %v523 = vunpack.c.l.b16 %v391
    %v524 = vunpack.c.l.b16 %v392
    %v525 = vunpack.c.l.b16 %v393
    %v526 = vunpack.c.l.b16 %v394
    %v527 = vunpack.c.l.b16 %v395
    %v528 = vunpack.c.l.b16 %v396
    %v529 = vunpack.c.l.b16 %v397
    %v530 = vunpack.c.l.b16 %v398
    %v531 = vunpack.c.l.b16 %v399
    %v532 = vunpack.c.l.b16 %v400
    %v533 = vunpack.c.l.b16 %v401
    %v534 = vunpack.c.l.b16 %v402
    %v535 = vunpack.c.l.b16 %v403
    %v536 = vunpack.c.l.b16 %v404
    %v537 = vunpack.c.l.b16 %v405
    %v538 = vunpack.c.l.b16 %v406
    %v539 = vunpack.c.l.b16 %v407
    %v540 = vunpack.c.l.b16 %v408
    %v541 = vunpack.c.l.b16 %v409
    %v542 = vunpack.c.l.b16 %v410
    %v543 = vunpack.c.l.b16 %v411
    %v544 = vunpack.c.l.b16 %v412
    %v545 = vunpack.c.l.b16 %v413
    %v546 = vunpack.c.l.b16 %v414
    %v547 = vunpack.c.l.b16 %v415
    %v548 = vunpack.c.l.b16 %v416
    %v549 = vunpack.c.l.b16 %v417
    %v550 = vunpack.c.l.b16 %v418
    %v551 = vunpack.c.l.b16 %v419
    %v552 = vunpack.c.l.b16 %v420
    %v553 = vunpack.c.l.b16 %v421
    %v554 = vunpack.c.l.b16 %v422
    %v555 = vunpack.c.l.b16 %v423
    %v556 = vunpack.c.l.b16 %v424
    %v557 = vunpack.c.l.b16 %v425
    %v558 = vunpack.c.l.b16 %v426
    %v559 = vunpack.c.l.b16 %v427
    %v560 = vunpack.c.l.b16 %v428
    %v561 = vunpack.c.l.b16 %v429
    %v562 = vunpack.c.l.b16 %v430
    %v563 = vunpack.c.l.b16 %v431
    %v564 = vunpack.c.l.b16 %v432
    %v565 = vunpack.c.l.b16 %v433
    %v566 = vunpack.c.l.b16 %v434
    %v567 = vpack.c.b16 %v504, %v503
    %v568 = vpack.c.b16 %v506, %v505
    %v569 = vpack.c.b16 %v508, %v507
    %v570 = vpack.c.b16 %v510, %v509
    %v571 = vpack.c.b16 %v512, %v511
    %v572 = vpack.c.b16 %v514, %v513
    %v573 = vpack.c.b16 %v516, %v515
    %v574 = vpack.c.b16 %v518, %v517
    %v575 = vpack.c.b16 %v520, %v519
    %v576 = vpack.c.b16 %v522, %v521
    %v577 = vpack.c.b16 %v524, %v523
    %v578 = vpack.c.b16 %v526, %v525
    %v579 = vpack.c.b16 %v528, %v527
    %v580 = vpack.c.b16 %v530, %v529
    %v581 = vpack.c.b16 %v532, %v531
    %v582 = vpack.c.b16 %v534, %v533
    %v583 = vpack.c.b16 %v536, %v535
    %v584 = vpack.c.b16 %v538, %v537
    %v585 = vpack.c.b16 %v540, %v539
    %v586 = vpack.c.b16 %v542, %v541
    %v587 = vpack.c.b16 %v544, %v543
    %v588 = vpack.c.b16 %v546, %v545
    %v589 = vpack.c.b16 %v548, %v547
    %v590 = vpack.c.b16 %v550, %v549
    %v591 = vpack.c.b16 %v552, %v551
    %v592 = vpack.c.b16 %v554, %v553
    %v593 = vpack.c.b16 %v556, %v555
    %v594 = vpack.c.b16 %v558, %v557
    %v595 = vpack.c.b16 %v560, %v559
    %v596 = vpack.c.b16 %v562, %v561
    %v597 = vpack.c.b16 %v564, %v563
    %v598 = vpack.c.b16 %v566, %v565
    %631 = vmatpush.bf16.msra.mxu0 %v574
    %632 = vmatpush.bf16.msra.mxu0 %v573
    %633 = vmatpush.bf16.msra.mxu0 %v572
    %634 = vmatpush.bf16.msra.mxu0 %v571
    %635 = vmatpush.bf16.msra.mxu0 %v570
    %636 = vmatpush.bf16.msra.mxu0 %v569
    %637 = vmatpush.bf16.msra.mxu0 %v568
    %638 = vmatpush.bf16.msra.mxu0 %v567
    %639 = vmatmul.bf16.gmra.mxu0 %v363
    %v640 = vpop.f32.mrf.mxu0
    %v641 = vadd.f32 %v437, %v640
    %v642 = vpop.f32.mrf.mxu0
    %v643 = vadd.f32 %v437, %v642
    %644 = vmatmul.bf16.gmra.mxu0 %v367
    %v645 = vpop.f32.mrf.mxu0
    %v646 = vadd.f32 %v437, %v645
    %v647 = vpop.f32.mrf.mxu0
    %v648 = vadd.f32 %v437, %v647
    %649 = vdwg.mxu0
    %650 = vmatpush.bf16.msra.mxu0 %v582
    %651 = vmatpush.bf16.msra.mxu0 %v581
    %652 = vmatpush.bf16.msra.mxu0 %v580
    %653 = vmatpush.bf16.msra.mxu0 %v579
    %654 = vmatpush.bf16.msra.mxu0 %v578
    %655 = vmatpush.bf16.msra.mxu0 %v577
    %656 = vmatpush.bf16.msra.mxu0 %v576
    %657 = vmatpush.bf16.msra.mxu0 %v575
    %658 = vmatmul.bf16.gmra.mxu0 %v364
    %v659 = vpop.f32.mrf.mxu0
    %v660 = vadd.f32 %v641, %v659
    %v661 = vpop.f32.mrf.mxu0
    %v662 = vadd.f32 %v643, %v661
    %663 = vmatmul.bf16.gmra.mxu0 %v368
    %v664 = vpop.f32.mrf.mxu0
    %v665 = vadd.f32 %v646, %v664
    %v666 = vpop.f32.mrf.mxu0
    %v667 = vadd.f32 %v648, %v666
    %668 = vdwg.mxu0
    %669 = vmatpush.bf16.msra.mxu0 %v590
    %670 = vmatpush.bf16.msra.mxu0 %v589
    %671 = vmatpush.bf16.msra.mxu0 %v588
    %672 = vmatpush.bf16.msra.mxu0 %v587
    %673 = vmatpush.bf16.msra.mxu0 %v586
    %674 = vmatpush.bf16.msra.mxu0 %v585
    %675 = vmatpush.bf16.msra.mxu0 %v584
    %676 = vmatpush.bf16.msra.mxu0 %v583
    %677 = vmatmul.bf16.gmra.mxu0 %v365
    %v678 = vpop.f32.mrf.mxu0
    %v679 = vadd.f32 %v660, %v678
    %v680 = vpop.f32.mrf.mxu0
    %v681 = vadd.f32 %v662, %v680
    %682 = vmatmul.bf16.gmra.mxu0 %v369
    %v683 = vpop.f32.mrf.mxu0
    %v684 = vadd.f32 %v665, %v683
    %v685 = vpop.f32.mrf.mxu0
    %v686 = vadd.f32 %v667, %v685
    %687 = vdwg.mxu0
    %688 = vmatpush.bf16.msra.mxu0 %v598
    %689 = vmatpush.bf16.msra.mxu0 %v597
    %690 = vmatpush.bf16.msra.mxu0 %v596
    %691 = vmatpush.bf16.msra.mxu0 %v595
    %692 = vmatpush.bf16.msra.mxu0 %v594
    %693 = vmatpush.bf16.msra.mxu0 %v593
    %694 = vmatpush.bf16.msra.mxu0 %v592
    %695 = vmatpush.bf16.msra.mxu0 %v591
    %696 = vmatmul.bf16.gmra.mxu0 %v366
    %v697 = vpop.f32.mrf.mxu0
    %v698 = vadd.f32 %v679, %v697
    %v699 = vpop.f32.mrf.mxu0
    %v700 = vadd.f32 %v681, %v699
    %701 = vmatmul.bf16.gmra.mxu0 %v370
    %v702 = vpop.f32.mrf.mxu0
    %v703 = vadd.f32 %v684, %v702
    %v704 = vpop.f32.mrf.mxu0
    %v705 = vadd.f32 %v686, %v704
    %706 = vdwg.mxu0
    %707 = vst [vmem:[%s4] sm:$0xff] %v698
    %708 = vst [vmem:[%s4 + $0x8] sm:$0xff] %v700
    %709 = vst [vmem:[%s4 + $0x10] sm:$0xff] %v703
    %710 = vst [vmem:[%s4 + $0x18] sm:$0xff] %v705
    // Predicated region
    $region22: #{mlp_pallas_packed.1} parent=1 // pred_check
      _
    $region23: #{mlp_pallas_packed.1} parent=1 // pred_check_branch
      %712 = sbr.rel (0) target = $region25
    $region24: #{mlp_pallas_packed.1} parent=1 // pred_region
      _
    $region25: #{mlp_pallas_packed.1} parent=1 // pred_fallthru
      _
    // Predicated region
    $region26: #{mlp_pallas_packed.1} parent=1 // pred_check
      _
    $region27: #{mlp_pallas_packed.1} parent=1 // pred_check_branch
      %714 = sbr.rel (0) target = $region29
    $region28: #{mlp_pallas_packed.1} parent=1 // pred_region
      _
    $region29: #{mlp_pallas_packed.1} parent=1 // pred_fallthru
      _
    %715 = vsyncpa [#allocation3], 1

</llo_original>
